<compile_context>
chip_gen: v7x
topology: tpu7x:2x2x1
jax: 0.10.0
libtpu: 0.0.40
codegen_flags: <defaults>
</compile_context>

<pallas_src>
import jax
import jax.numpy as jnp
from jax.experimental import pallas as pl
from jax.experimental.pallas import tpu as pltpu


def frozen_bn_kernel(x_ref, scale_ref, shift_ref, o_ref):
    # x_ref/o_ref: (1, TC, S); scale_ref/shift_ref: (TC, 1) float32.
    x = x_ref[...].astype(jnp.float32)
    o_ref[...] = (x * scale_ref[...] + shift_ref[...]).astype(o_ref.dtype)


def _plan_tiling(N, C, HW, itemsize,
                 budget_bytes=3 * 1024 * 1024,
                 min_split_bytes=1 * 1024 * 1024):
    """Returns ("C", TC) for channel-slab tiling or ("HW", THW) as fallback.

    Channel slabs (TC, HW) are contiguous in NCHW -> one linear DMA per block.
    Fallback to spatial tiling only when even an 8-channel slab blows the
    per-block VMEM budget.
    """
    min_tc = C if C < 8 else 8
    if min_tc * HW * itemsize > budget_bytes:
        # --- fallback: tile the spatial axis with full C ---
        thw = (budget_bytes // max(1, C * itemsize)) // 128 * 128
        thw = max(128, thw)
        if thw >= HW:
            return ("HW", HW)
        # Prefer a THW that divides HW (avoids a masked tail block), but only
        # shrink by at most a few 128-steps so we don't wreck the block size.
        lo = max(128, thw - 4 * 128)
        for cand in range(thw, lo - 1, -128):
            if HW % cand == 0:
                thw = cand
                break
        return ("HW", thw)

    # --- preferred: tile the channel axis ---
    per_image = C * HW * itemsize
    n_blocks = pl.cdiv(per_image, budget_bytes)
    # Keep both v7x TensorCores busy: never a single-block parallel grid for a
    # non-trivial tensor when N == 1.
    if N == 1 and n_blocks == 1 and per_image > min_split_bytes and C >= 2 * min_tc:
        n_blocks = 2
    tc = pl.cdiv(C, n_blocks)
    if tc >= C:
        return ("C", C)
    tc = ((tc + 7) // 8) * 8  # TC < C must be a multiple of 8 (sublane rule)
    if tc >= C:
        return ("C", C)
    return ("C", tc)


def frozen_batch_norm_2d(x, weight, bias, running_mean, running_var,
                         *, eps=1e-5, donate_x=False,
                         block_budget_bytes=3 * 1024 * 1024):
    """Matches FrozenBatchNorm2d.forward: x * (w*rsqrt(rv+eps)) + (b - rm*scale)."""
    N, C, H, W = x.shape
    HW = H * W
    itemsize = x.dtype.itemsize

    # Fold affine+stats into per-channel scale/shift in float32 (PyTorch keeps
    # the frozen buffers in float32 regardless of activation dtype).
    w32 = weight.astype(jnp.float32)
    b32 = bias.astype(jnp.float32)
    rm32 = running_mean.astype(jnp.float32)
    rv32 = running_var.astype(jnp.float32)
    scale = w32 * jax.lax.rsqrt(rv32 + eps)
    shift = b32 - rm32 * scale
    scale = scale.reshape(C, 1)
    shift = shift.reshape(C, 1)

    x3 = x.reshape(N, C, HW)
    mode, tile = _plan_tiling(N, C, HW, itemsize, budget_bytes=block_budget_bytes)

    if mode == "C":
        grid = (N, pl.cdiv(C, tile))
        x_spec = pl.BlockSpec((1, tile, HW), lambda n, c: (n, c, 0))
        p_spec = pl.BlockSpec((tile, 1), lambda n, c: (c, 0))
    else:  # "HW" fallback (small C, very large spatial extent)
        grid = (N, pl.cdiv(HW, tile))
        x_spec = pl.BlockSpec((1, C, tile), lambda n, s: (n, 0, s))
        p_spec = pl.BlockSpec((C, 1), lambda n, s: (0, 0))

    call_kwargs = {}
    if donate_x:
        # Reuse x's HBM buffer for the output. Only safe if the caller never
        # reads x again (and only a true in-place update if x is donated to jit).
        call_kwargs["input_output_aliases"] = {0: 0}

    cost = pl.CostEstimate(
        flops=2 * N * C * HW,
        transcendentals=0,
        bytes_accessed=2 * N * C * HW * itemsize + 2 * C * 4,
    )

    out = pl.pallas_call(
        frozen_bn_kernel,
        out_shape=jax.ShapeDtypeStruct((N, C, HW), x.dtype),
        grid=grid,
        in_specs=[x_spec, p_spec, p_spec],
        out_specs=x_spec,
        compiler_params=pltpu.CompilerParams(
            dimension_semantics=("parallel", "parallel")),
        cost_estimate=cost,
        **call_kwargs,
    )(x3, scale, shift)
    return out.reshape(N, C, H, W)


def _reference(x, weight, bias, running_mean, running_var, eps=1e-5):
    # Pure-JAX mirror of the PyTorch forward (float32 buffers).
    scale = weight.astype(jnp.float32).reshape(1, -1, 1, 1) * jax.lax.rsqrt(
        running_var.astype(jnp.float32).reshape(1, -1, 1, 1) + eps)
    shift = (bias.astype(jnp.float32).reshape(1, -1, 1, 1)
             - running_mean.astype(jnp.float32).reshape(1, -1, 1, 1) * scale)
    return (x.astype(jnp.float32) * scale + shift).astype(x.dtype)


def _rand_params(key, C):
    kw, kb, km, kv = jax.random.split(key, 4)
    weight = 1.0 + 0.1 * jax.random.normal(kw, (C,), dtype=jnp.float32)
    bias = 0.1 * jax.random.normal(kb, (C,), dtype=jnp.float32)
    running_mean = 0.5 * jax.random.normal(km, (C,), dtype=jnp.float32)
    running_var = jnp.abs(jax.random.normal(kv, (C,), dtype=jnp.float32)) + 0.5
    return weight, bias, running_mean, running_var


if __name__ == "__main__":
    key = jax.random.PRNGKey(0)
    k1, k2, k3, kp1, kp2, kp3 = jax.random.split(key, 6)

    # Test 1: small shape consistent with the module (batch=2, C=4, 16x16).
    # Channel-slab path with a single full-C block per image, grid (2, 1).
    N, C, H, W = 2, 4, 16, 16
    x = jax.random.normal(k1, (N, C, H, W), dtype=jnp.float32)
    w, b, rm, rv = _rand_params(kp1, C)
    y = jax.block_until_ready(frozen_batch_norm_2d(x, w, b, rm, rv))
    y_ref = _reference(x, w, b, rm, rv)
    assert y.shape == x.shape and y.dtype == x.dtype
    assert jnp.allclose(y, y_ref, atol=1e-5, rtol=1e-5), "mismatch (test 1)"

    # Test 2: N=1 with a non-trivial tensor -> forced channel split (grid (1, 2))
    # and a partially-masked last channel block (C=24 not a multiple of TC=16).
    N2, C2, H2, W2 = 1, 24, 128, 128
    x2 = jax.random.normal(k2, (N2, C2, H2, W2), dtype=jnp.float32)
    w2, b2, rm2, rv2 = _rand_params(kp2, C2)
    y2 = jax.block_until_ready(frozen_batch_norm_2d(x2, w2, b2, rm2, rv2))
    y2_ref = _reference(x2, w2, b2, rm2, rv2)
    assert jnp.allclose(y2, y2_ref, atol=1e-5, rtol=1e-5), "mismatch (test 2)"

    # Test 3: exercise the HW-tiling fallback (tiny artificial budget) with a
    # spatial extent that is not a multiple of the tile -> masked tail block.
    N3, C3, H3, W3 = 1, 4, 24, 24
    x3 = jax.random.normal(k3, (N3, C3, H3, W3), dtype=jnp.float32)
    w3, b3, rm3, rv3 = _rand_params(kp3, C3)
    y3 = jax.block_until_ready(
        frozen_batch_norm_2d(x3, w3, b3, rm3, rv3, block_budget_bytes=4096))
    y3_ref = _reference(x3, w3, b3, rm3, rv3)
    assert jnp.allclose(y3, y3_ref, atol=1e-5, rtol=1e-5), "mismatch (test 3)"

    print("KERNEL_OK")
</pallas_src>

<mosaic_0001>
module attributes {stable_mosaic.version = 11 : i64} {
  func.func @frozen_bn_kernel(%arg0: i32, %arg1: i32, %arg2: memref<1x4x256xf32, #tpu.memory_space<vmem>>, %arg3: memref<4x1xf32, #tpu.memory_space<vmem>>, %arg4: memref<4x1xf32, #tpu.memory_space<vmem>>, %arg5: memref<1x4x256xf32, #tpu.memory_space<vmem>>) attributes {dimension_semantics = [#tpu.dimension_semantics<parallel>, #tpu.dimension_semantics<parallel>], iteration_bounds = array<i64: 2, 1>, scalar_prefetch = 0 : i64, scratch_operands = 0 : i64, tpu.core_type = #tpu.core_type<tc>, window_params = [{transform_indices = @transform_0, window_bounds = array<i64: 1, 4, 256>}, {transform_indices = @transform_1, window_bounds = array<i64: 4, 1>}, {transform_indices = @transform_2, window_bounds = array<i64: 4, 1>}, {transform_indices = @transform_3, window_bounds = array<i64: 1, 4, 256>}]} {
    %c0 = arith.constant 0 : index
    %c0_0 = arith.constant 0 : index
    %c0_1 = arith.constant 0 : index
    %0 = vector.load %arg2[%c0, %c0_0, %c0_1] : memref<1x4x256xf32, #tpu.memory_space<vmem>>, vector<1x4x256xf32>
    %c0_2 = arith.constant 0 : index
    %c0_3 = arith.constant 0 : index
    %1 = vector.load %arg3[%c0_2, %c0_3] : memref<4x1xf32, #tpu.memory_space<vmem>>, vector<4x1xf32>
    %2 = vector.shape_cast %1 : vector<4x1xf32> to vector<1x4x1xf32>
    %3 = vector.broadcast %2 : vector<1x4x1xf32> to vector<1x4x256xf32>
    %4 = arith.mulf %0, %3 : vector<1x4x256xf32>
    %c0_4 = arith.constant 0 : index
    %c0_5 = arith.constant 0 : index
    %5 = vector.load %arg4[%c0_4, %c0_5] : memref<4x1xf32, #tpu.memory_space<vmem>>, vector<4x1xf32>
    %6 = vector.shape_cast %5 : vector<4x1xf32> to vector<1x4x1xf32>
    %7 = vector.broadcast %6 : vector<1x4x1xf32> to vector<1x4x256xf32>
    %8 = arith.addf %4, %7 : vector<1x4x256xf32>
    %c0_6 = arith.constant 0 : index
    %c0_7 = arith.constant 0 : index
    %c0_8 = arith.constant 0 : index
    %9 = vector.load %arg5[%c0_6, %c0_7, %c0_8] : memref<1x4x256xf32, #tpu.memory_space<vmem>>, vector<1x4x256xf32>
    tpu.vector_store %arg5[%c0_6, %c0_7, %c0_8], %8 {strides = array<i32>} : memref<1x4x256xf32, #tpu.memory_space<vmem>>, vector<1x4x256xf32>,
    return
  }
  func.func @transform_0(%arg0: i32, %arg1: i32) -> (i32, i32, i32) {
    %c0_i32 = arith.constant 0 : i32
    %c0_i32_0 = arith.constant 0 : i32
    return %arg0, %arg1, %c0_i32 : i32, i32, i32
  }
  func.func @transform_1(%arg0: i32, %arg1: i32) -> (i32, i32) {
    %c0_i32 = arith.constant 0 : i32
    %c0_i32_0 = arith.constant 0 : i32
    return %arg1, %c0_i32 : i32, i32
  }
  func.func @transform_2(%arg0: i32, %arg1: i32) -> (i32, i32) {
    %c0_i32 = arith.constant 0 : i32
    %c0_i32_0 = arith.constant 0 : i32
    return %arg1, %c0_i32 : i32, i32
  }
  func.func @transform_3(%arg0: i32, %arg1: i32) -> (i32, i32, i32) {
    %c0_i32 = arith.constant 0 : i32
    %c0_i32_0 = arith.constant 0 : i32
    return %arg0, %arg1, %c0_i32 : i32, i32, i32
  }
}

</mosaic_0001>

<llo_original>
// kernel: tpu_custom_call.1
$region0: #{tpu_custom_call.1}
  #allocation0 [shape = 'u32[]', space=smem, size = 0x4, offset = 0x4, fixed_abs, tag = 'smem constant byte address 0x4 - core index']
  #allocation1 [shape = 'u32[144,128]{1,0:T(1,128)}', space=vmem, size = 0x12000, scoped, tag = 'internal scratch']
  %s0 = inlined_call_operand.hbm [shape: f32[2,4,256], index: 0, kind: input, shape index: {}]
  %s1 = inlined_call_operand.vmem [shape: f32[4,1], index: 1, kind: input, shape index: {}]
  %s2 = inlined_call_operand.vmem [shape: f32[4,1], index: 2, kind: input, shape index: {}]
  %s3 = inlined_call_operand.hbm [shape: f32[2,4,256], index: 3, kind: output, shape index: {}]
  %s4 = sld [smem:[#allocation0]]
  $region49: #{tpu_custom_call.1} parent=0
    _
  %s6 = ssub.s32 1, %s4
  %s7 = scalar_select 0, %s6, %s4
  $region1: #{tpu_custom_call.1} parent=0
    #allocation2 [shape = 'u8[8192]{0}', space=vmem, size = 0x2000, scoped, tag = 'input window, operand 0']
    #allocation3 [shape = 's32[2]{0}', space=sflag, size = 0x8, scoped, tag = 'scoped memory for tpu_custom_call.1']
    #allocation4 [shape = 's32[2]{0}', space=sflag, size = 0x8, scoped, tag = 'scoped memory for tpu_custom_call.1']
    #allocation5 [shape = 'u8[8192]{0}', space=vmem, size = 0x2000, scoped, tag = 'output window, operand 0']
    %8 = vsyncpa [#allocation3], 0
    %s9 = scalar_lea.sflag [#allocation3], 1
    %10 = vsyncpa %s9, 0
    %11 = vsyncpa [#allocation4], 0
    %s12 = scalar_lea.sflag [#allocation4], 1
    %13 = vsyncpa %s12, 0
    loop: start=0, step=1, limit=4
    $region2: #{tpu_custom_call.1} parent=1 // loop_pre_header
      _
    $region3: #{tpu_custom_call.1} parent=1 // loop_header
      %s15 = sphi 0, %s19
      %p16 = scmp.ge.s32.totalorder %s15, 4
      %s22 = sphi 0, %s34
      %s23 = sphi 0, %s30
      %s24 = sphi 0, %s22
      %s25 = sphi 0, %s23
      %s26 = sphi 0, %s24
      %s27 = sphi 0, %s25
      %s39 = sphi 0, %s41
      %s42 = sphi 0, %s39
      %s43 = sphi 0, %s42
      %s59 = sphi 0, %s43
      %s65 = sphi 0, %s67
      %s68 = sphi 0, %s65
      %s69 = sphi 0, %s68
      %s85 = sphi 0, %s69
      %s91 = sphi 0, %s93
      %s94 = sphi 0, %s91
      %s95 = sphi 0, %s94
      %s111 = sphi 0, %s95
      %s119 = sphi 0, %s121
      %s122 = sphi 0, %s119
      %s123 = sphi 0, %s122
      %s139 = sphi 0, %s123
    $region4: #{tpu_custom_call.1} parent=1 // loop_header_branch
      %18 = sbr.rel (%p16) target = $region8
    $region5: #{tpu_custom_call.1} parent=1 // loop_body
      %s20 = ssub.s32 %s15, 1
      %s21 = ssub.s32 %s15, 2
      %s28 = sadd.s32 1, %s23
      %p29 = scmp.ge.s32.totalorder %s28, 1
      %s30 = scalar_select %p29, 0, %s28
      %s31 = sadd.s32 1, %s22
      %s32 = scalar_select %p29, %s31, %s22
      %p33 = scmp.ge.s32.totalorder %s32, 2
      %s34 = scalar_select %p33, 0, %s32
      %s35 = ssub.s32 %s22, %s34
      %s36 = ssub.s32 %s23, %s30
      %s37 = sor.u32 %s35, %s36
      %p38 = scmp.eq.s32.totalorder %s37, 0
      %s40 = sadd.s32 %s39, 1
      %s41 = scalar_select %p38, %s39, %s40
      %p44 = pneg %p38
      %p45 = scmp.eq.s32.totalorder %s15, 1
      %p46 = por %p44, %p45
      %p47 = scmp.ne.s32.totalorder %s39, %s42
      %p48 = scmp.eq.s32.totalorder %s15, 0
      %p49 = por %p47, %p48
      %p50 = scmp.ne.s32.totalorder %s39, %s42
      %p51 = scmp.eq.s32.totalorder %s20, 1
      %p52 = por %p50, %p51
      %p53 = scmp.ne.s32.totalorder %s42, %s43
      %p54 = scmp.eq.s32.totalorder %s20, 0
      %p55 = por %p53, %p54
      %p56 = scmp.ne.s32.totalorder %s42, %s43
      %p57 = scmp.eq.s32.totalorder %s21, 1
      %p58 = por %p56, %p57
      %p60 = scmp.ne.s32.totalorder %s43, %s59
      %p61 = scmp.eq.s32.totalorder %s21, 0
      %p62 = por %p60, %p61
      %s63 = ssub.s32 %s23, %s30
      %p64 = scmp.eq.s32.totalorder %s63, 0
      %s66 = sadd.s32 %s65, 1
      %s67 = scalar_select %p64, %s65, %s66
      %p70 = pneg %p64
      %p71 = scmp.eq.s32.totalorder %s15, 1
      %p72 = por %p70, %p71
      %p73 = scmp.ne.s32.totalorder %s65, %s68
      %p74 = scmp.eq.s32.totalorder %s15, 0
      %p75 = por %p73, %p74
      %p76 = scmp.ne.s32.totalorder %s65, %s68
      %p77 = scmp.eq.s32.totalorder %s20, 1
      %p78 = por %p76, %p77
      %p79 = scmp.ne.s32.totalorder %s68, %s69
      %p80 = scmp.eq.s32.totalorder %s20, 0
      %p81 = por %p79, %p80
      %p82 = scmp.ne.s32.totalorder %s68, %s69
      %p83 = scmp.eq.s32.totalorder %s21, 1
      %p84 = por %p82, %p83
      %p86 = scmp.ne.s32.totalorder %s69, %s85
      %p87 = scmp.eq.s32.totalorder %s21, 0
      %p88 = por %p86, %p87
      %s89 = ssub.s32 %s23, %s30
      %p90 = scmp.eq.s32.totalorder %s89, 0
      %s92 = sadd.s32 %s91, 1
      %s93 = scalar_select %p90, %s91, %s92
      %p96 = pneg %p90
      %p97 = scmp.eq.s32.totalorder %s15, 1
      %p98 = por %p96, %p97
      %p99 = scmp.ne.s32.totalorder %s91, %s94
      %p100 = scmp.eq.s32.totalorder %s15, 0
      %p101 = por %p99, %p100
      %p102 = scmp.ne.s32.totalorder %s91, %s94
      %p103 = scmp.eq.s32.totalorder %s20, 1
      %p104 = por %p102, %p103
      %p105 = scmp.ne.s32.totalorder %s94, %s95
      %p106 = scmp.eq.s32.totalorder %s20, 0
      %p107 = por %p105, %p106
      %p108 = scmp.ne.s32.totalorder %s94, %s95
      %p109 = scmp.eq.s32.totalorder %s21, 1
      %p110 = por %p108, %p109
      %p112 = scmp.ne.s32.totalorder %s95, %s111
      %p113 = scmp.eq.s32.totalorder %s21, 0
      %p114 = por %p112, %p113
      %s115 = ssub.s32 %s22, %s34
      %s116 = ssub.s32 %s23, %s30
      %s117 = sor.u32 %s115, %s116
      %p118 = scmp.eq.s32.totalorder %s117, 0
      %s120 = sadd.s32 %s119, 1
      %s121 = scalar_select %p118, %s119, %s120
      %p124 = pneg %p118
      %p125 = scmp.eq.s32.totalorder %s15, 1
      %p126 = por %p124, %p125
      %p127 = scmp.ne.s32.totalorder %s119, %s122
      %p128 = scmp.eq.s32.totalorder %s15, 0
      %p129 = por %p127, %p128
      %p130 = scmp.ne.s32.totalorder %s119, %s122
      %p131 = scmp.eq.s32.totalorder %s20, 1
      %p132 = por %p130, %p131
      %p133 = scmp.ne.s32.totalorder %s122, %s123
      %p134 = scmp.eq.s32.totalorder %s20, 0
      %p135 = por %p133, %p134
      %p136 = scmp.ne.s32.totalorder %s122, %s123
      %p137 = scmp.eq.s32.totalorder %s21, 1
      %p138 = por %p136, %p137
      %p140 = scmp.ne.s32.totalorder %s123, %s139
      %p141 = scmp.eq.s32.totalorder %s21, 0
      %p142 = por %p140, %p141
      %p143 = scmp.le.s32.totalorder 1, %s15
      %p144 = scmp.lt.s32.totalorder %s15, 3
      %p145 = pnand %p143, %p144
      %p146 = pneg %p145
      // Predicated region
      $region9: #{tpu_custom_call.1} parent=5 // pred_check
        _
      $region10: #{tpu_custom_call.1} parent=5 // pred_check_branch
        %148 = sbr.rel (%p145) target = $region12
      $region11: #{tpu_custom_call.1} parent=5 // pred_region
        %s149 = ssub.s32 %s15, 1
        // Predicated region
        $region13: #{tpu_custom_call.1} parent=11 // pred_check
          %p150 = pneg %p81
        $region14: #{tpu_custom_call.1} parent=11 // pred_check_branch
          %152 = sbr.rel (%p150) target = $region16
        $region15: #{tpu_custom_call.1} parent=11 // pred_region
          %p153 = scmp.lt.s32.totalorder %s25, 0
          %s154 = scalar_select %p153, %s25, 0
          %s155 = smul.addr %s154, 4
          %s156 = scalar_lea.vmem %s1, %s155
        $region16: #{tpu_custom_call.1} parent=11 // pred_fallthru
          _
        // Predicated region
        $region17: #{tpu_custom_call.1} parent=11 // pred_check
          %p157 = pneg %p107
        $region18: #{tpu_custom_call.1} parent=11 // pred_check_branch
          %159 = sbr.rel (%p157) target = $region20
        $region19: #{tpu_custom_call.1} parent=11 // pred_region
          %p160 = scmp.lt.s32.totalorder %s25, 0
          %s161 = scalar_select %p160, %s25, 0
          %s162 = smul.addr %s161, 4
          %s163 = scalar_lea.vmem %s2, %s162
        $region20: #{tpu_custom_call.1} parent=11 // pred_fallthru
          _
      $region12: #{tpu_custom_call.1} parent=5 // pred_fallthru
        _
      %p164 = scmp.lt.s32.totalorder %s15, 2
      // Predicated region
      $region21: #{tpu_custom_call.1} parent=5 // pred_check
        %p165 = pneg %p164
      $region22: #{tpu_custom_call.1} parent=5 // pred_check_branch
        %167 = sbr.rel (%p165) target = $region24
      $region23: #{tpu_custom_call.1} parent=5 // pred_region
        // Predicated region
        $region25: #{tpu_custom_call.1} parent=23 // pred_check
          %p168 = pneg %p49
        $region26: #{tpu_custom_call.1} parent=23 // pred_check_branch
          %170 = sbr.rel (%p168) target = $region28
        $region27: #{tpu_custom_call.1} parent=23 // pred_region
          %s171 = sand.u32 %s39, 1
          %s172 = scalar_lea.sflag [#allocation3], %s171
          %s173 = sand.u32 %s39, 1
          %s174 = smul.addr %s173, 8
          %s175 = scalar_lea.vmem [#allocation2], %s174
          %s177 = ssub.s32 128, 128
          %178 = vsyncadd %s172, %s177
          %s179 = smul.addr %s23, 2
          %s180 = smul.addr %s22, 2
          %s181 = sadd.s32 %s179, %s180
          %s182 = smul.addr %s181, 64
          %s183 = scalar_lea.hbm %s0, %s182
          %s185 = sshll.u32 %s175, 4
          %s186 = int_to_ptr.vmem [resolvable:$true] %s185
          %188 = dma.hbm_to_vmem [thread:$0]  %s183, 128, %s186, %s172
        $region28: #{tpu_custom_call.1} parent=23 // pred_fallthru
          _
      $region24: #{tpu_custom_call.1} parent=5 // pred_fallthru
        _
      %p189 = scmp.le.s32.totalorder 1, %s15
      %p190 = scmp.lt.s32.totalorder %s15, 3
      %p191 = pnand %p189, %p190
      %p192 = pneg %p191
      // Predicated region
      $region29: #{tpu_custom_call.1} parent=5 // pred_check
        _
      $region30: #{tpu_custom_call.1} parent=5 // pred_check_branch
        %194 = sbr.rel (%p191) target = $region32
      $region31: #{tpu_custom_call.1} parent=5 // pred_region
        %s195 = ssub.s32 %s15, 1
        %s196 = sand.u32 %s42, 1
        %s197 = scalar_lea.sflag [#allocation3], %s196
        %s198 = sand.u32 %s42, 1
        %s199 = smul.addr %s198, 8
        %s200 = scalar_lea.vmem [#allocation2], %s199
        // Predicated region
        $region33: #{tpu_custom_call.1} parent=31 // pred_check
          %p201 = pneg %p55
        $region34: #{tpu_custom_call.1} parent=31 // pred_check_branch
          %203 = sbr.rel (%p201) target = $region36
        $region35: #{tpu_custom_call.1} parent=31 // pred_region
          %204 = dma.done %s197, 128
        $region36: #{tpu_custom_call.1} parent=31 // pred_fallthru
          _
        %s205 = sand.u32 %s42, 1
        %s206 = scalar_lea.sflag [#allocation3], %s205
        %s207 = sand.u32 %s42, 1
        %s208 = smul.addr %s207, 8
        %s209 = scalar_lea.vmem [#allocation2], %s208
        %p210 = pneg %p55
        %p211 = pneg %p52
        %p212 = scmp.lt.s32.totalorder %s25, 0
        %s213 = scalar_select %p212, %s25, 0
        %s214 = smul.addr %s213, 4
        %s215 = scalar_lea.vmem %s1, %s214
        %p216 = pneg %p81
        %p217 = pneg %p78
        %p218 = scmp.lt.s32.totalorder %s25, 0
        %s219 = scalar_select %p218, %s25, 0
        %s220 = smul.addr %s219, 4
        %s221 = scalar_lea.vmem %s2, %s220
        %p222 = pneg %p107
        %p223 = pneg %p104
        %p224 = pneg %p135
        %p225 = pneg %p132
        %s226 = sand.u32 %s122, 1
        %s227 = scalar_lea.sflag [#allocation4], %s226
        %s228 = sand.u32 %s122, 1
        %s229 = smul.addr %s228, 8
        %s230 = scalar_lea.vmem [#allocation5], %s229
        %p231 = scmp.lt.s32.totalorder %s25, 0
        %s232 = scalar_select %p231, %s25, 0
        %s233 = smul.addr %s232, 4
        %s234 = scalar_lea.vmem %s1, %s233
        %p235 = scmp.lt.s32.totalorder %s25, 0
        %s236 = scalar_select %p235, %s25, 0
        %s237 = smul.addr %s236, 4
        %s238 = scalar_lea.vmem %s2, %s237
        %v239 = vld [vmem:[%s200] sm:$0xff]
        %v240 = vld [vmem:[%s234] sm:$0xf]
        %242 = vset.pattern.permute.xlu0 0
        %243 = vperm.xlu0 %242, %v240
        %v244 = vpop.permute.xlu0 %243
        %v246 = vunpack.c.l.s4 839922192
        %v247 = vunpack.c.0.s8 %v246
        %v248 = vlaneseq
        %v249 = vshrl.u32 %v248, 7
        %v250 = vsub.s32 %v247, %v249
        %v251 = vrot.slane %v244, %v250
        %v253 = vmul.f32 %v239, %v251
        %v254 = vld [vmem:[%s238] sm:$0xf]
        %256 = vset.pattern.permute.xlu0 0
        %257 = vperm.xlu0 %256, %v254
        %v258 = vpop.permute.xlu0 %257
        %v260 = vunpack.c.l.s4 839922192
        %v261 = vunpack.c.0.s8 %v260
        %v262 = vlaneseq
        %v263 = vshrl.u32 %v262, 7
        %v264 = vsub.s32 %v261, %v263
        %v265 = vrot.slane %v258, %v264
        %v267 = vadd.f32 %v253, %v265
        %268 = vst [vmem:[%s230] sm:$0xff] %v267
        %s269 = sand.u32 %s122, 1
        %s270 = scalar_lea.sflag [#allocation4], %s269
        %s271 = sand.u32 %s122, 1
        %s272 = smul.addr %s271, 8
        %s273 = scalar_lea.vmem [#allocation5], %s272
        // Predicated region
        $region37: #{tpu_custom_call.1} parent=31 // pred_check
          %p274 = pneg %p132
        $region38: #{tpu_custom_call.1} parent=31 // pred_check_branch
          %276 = sbr.rel (%p274) target = $region40
        $region39: #{tpu_custom_call.1} parent=31 // pred_region
          %s278 = ssub.s32 128, 128
          %279 = vsyncadd %s270, %s278
          %s280 = smul.addr %s25, 2
          %s281 = smul.addr %s24, 2
          %s282 = sadd.s32 %s280, %s281
          %s283 = smul.addr %s282, 64
          %s284 = scalar_lea.hbm %s3, %s283
          %s286 = sshll.u32 %s273, 4
          %s287 = int_to_ptr.vmem [resolvable:$true] %s286
          %289 = dma.vmem_to_hbm [thread:$0]  %s287, 128, %s284, %s270
        $region40: #{tpu_custom_call.1} parent=31 // pred_fallthru
          _
      $region32: #{tpu_custom_call.1} parent=5 // pred_fallthru
        _
      %p290 = scmp.le.s32.totalorder 2, %s15
      // Predicated region
      $region41: #{tpu_custom_call.1} parent=5 // pred_check
        %p291 = pneg %p290
      $region42: #{tpu_custom_call.1} parent=5 // pred_check_branch
        %293 = sbr.rel (%p291) target = $region44
      $region43: #{tpu_custom_call.1} parent=5 // pred_region
        %s294 = ssub.s32 %s15, 2
        // Predicated region
        $region45: #{tpu_custom_call.1} parent=43 // pred_check
          %p295 = pneg %p138
        $region46: #{tpu_custom_call.1} parent=43 // pred_check_branch
          %297 = sbr.rel (%p295) target = $region48
        $region47: #{tpu_custom_call.1} parent=43 // pred_region
          %s298 = sand.u32 %s123, 1
          %s299 = scalar_lea.sflag [#allocation4], %s298
          %s300 = sand.u32 %s123, 1
          %s301 = smul.addr %s300, 8
          %s302 = scalar_lea.vmem [#allocation5], %s301
          %303 = dma.done %s299, 128
        $region48: #{tpu_custom_call.1} parent=43 // pred_fallthru
          _
      $region44: #{tpu_custom_call.1} parent=5 // pred_fallthru
        _
    $region6: #{tpu_custom_call.1} parent=1 // loop_footer
      %s19 = sadd.s32 1, %s15
    $region7: #{tpu_custom_call.1} parent=1 // loop_footer_branch
      %14 = sbr.rel target = $region3
    $region8: #{tpu_custom_call.1} parent=1 // loop_exit
      _
    %304 = vsyncpa [#allocation3], 1
    %s305 = scalar_lea.sflag [#allocation3], 1
    %306 = vsyncpa %s305, 1
    %307 = vsyncpa [#allocation4], 1
    %s308 = scalar_lea.sflag [#allocation4], 1
    %309 = vsyncpa %s308, 1

</llo_original>
